<compile_context>
chip_gen: v7x
topology: tpu7x:2x2x1
jax: 0.10.0
libtpu: 0.0.40
codegen_flags: <defaults>
</compile_context>

<pallas_src>
import jax
import jax.numpy as jnp
from jax.experimental import pallas as pl
from jax.experimental.pallas import tpu as pltpu


def _decoder_kernel(state_ref, w_ref, b_ref, out_ref):
    # state_ref: (TB, S)  w_ref: (S, C)  b_ref: (1, C)  out_ref: (TB, C)
    # Native-dtype operands into the MXU, f32 accumulation.
    logits = jnp.dot(state_ref[...], w_ref[...],
                     preferred_element_type=jnp.float32)
    logits = logits + b_ref[...].astype(jnp.float32)

    # Numerically stable softmax over the class axis (row-local).
    m = jnp.max(logits, axis=-1, keepdims=True)
    e = jnp.exp(logits - m)
    denom = jnp.sum(e, axis=-1, keepdims=True)
    # Exact divide: rows sum to 1.0 up to f32 rounding (approx reciprocal was
    # not accurate enough for downstream code that assumes normalization).
    out_ref[...] = (e / denom).astype(out_ref.dtype)


def _cdiv(a, b):
    return (a + b - 1) // b


def _round_up(x, m):
    return ((x + m - 1) // m) * m


def multimod_class_decoder(state, weight, bias, *, batch_tile=2048,
                           vmem_budget_bytes=8 * 1024 * 1024):
    """state: (B, S), weight: (S, C) (= torch fc.weight.T), bias: (C,)
    -> (B, C) softmax probabilities (float32)."""
    B, S = state.shape
    C = weight.shape[1]
    out_dtype = jnp.float32

    bias2 = bias.astype(jnp.float32).reshape(1, C)

    s_isz = jnp.dtype(state.dtype).itemsize
    w_isz = jnp.dtype(weight.dtype).itemsize
    # Honest (unpadded) traffic estimate so XLA doesn't over-schedule this op.
    cost = pl.CostEstimate(
        flops=2 * B * S * C + 5 * B * C,
        transcendentals=B * C,
        bytes_accessed=B * S * s_isz + S * C * w_isz + C * 4 + B * C * 4,
    )

    # Bytes resident if we run gridless with full arrays in VMEM.
    full_vmem_bytes = B * S * s_isz + S * C * w_isz + C * 4 + B * C * 4

    if B <= batch_tile and full_vmem_bytes <= vmem_budget_bytes:
        # Small problem: single gridless call, full arrays resident in VMEM,
        # no pipeline prologue/epilogue overhead, no padding anywhere.
        return pl.pallas_call(
            _decoder_kernel,
            out_shape=jax.ShapeDtypeStruct((B, C), out_dtype),
            in_specs=[
                pl.BlockSpec(memory_space=pltpu.MemorySpace.VMEM),
                pl.BlockSpec(memory_space=pltpu.MemorySpace.VMEM),
                pl.BlockSpec(memory_space=pltpu.MemorySpace.VMEM),
            ],
            out_specs=pl.BlockSpec(memory_space=pltpu.MemorySpace.VMEM),
            cost_estimate=cost,
        )(state, weight, bias2)

    # Large batch: tile over batch with a 'parallel' grid axis; weight/bias
    # use a constant index_map (stay VMEM-resident across steps).
    # >= 2 steps so v7x can shard the batch axis across both TensorCores.
    n_steps = max(2, _cdiv(B, batch_tile))
    tb = _round_up(_cdiv(B, n_steps), 8)
    # Cap the double-buffered (state-in + prob-out) block bytes by the budget
    # so the same code stays within v7x's smaller scoped VMEM.
    per_row_bytes = 2 * (S * s_isz + C * 4)
    tb_cap = max(8, (vmem_budget_bytes // per_row_bytes) // 8 * 8)
    tb = max(8, min(tb, tb_cap))

    return pl.pallas_call(
        _decoder_kernel,
        out_shape=jax.ShapeDtypeStruct((B, C), out_dtype),
        grid=(_cdiv(B, tb),),
        in_specs=[
            pl.BlockSpec((tb, S), lambda i: (i, 0)),   # last dim = full S: legal
            pl.BlockSpec((S, C), lambda i: (0, 0)),    # invariant across steps
            pl.BlockSpec((1, C), lambda i: (0, 0)),    # invariant across steps
        ],
        out_specs=pl.BlockSpec((tb, C), lambda i: (i, 0)),
        compiler_params=pltpu.CompilerParams(
            dimension_semantics=("parallel",)),
        cost_estimate=cost,
    )(state, weight, bias2)


if __name__ == "__main__":
    key = jax.random.PRNGKey(0)
    k_state, k_w, k_b, k_state2 = jax.random.split(key, 4)

    state_size = 32   # MultiModDecoder(state_size)
    n_classes = 8     # concrete ClassDecoder output size

    # Deterministic synthetic parameters (nn.Linear(state_size, n_classes)).
    weight = jax.random.normal(k_w, (state_size, n_classes), dtype=jnp.float32) * 0.1
    bias = jax.random.normal(k_b, (n_classes,), dtype=jnp.float32) * 0.1

    # --- Path 1: small batch (gridless, full-array VMEM blocks) ---
    batch = 8
    state = jax.random.normal(k_state, (batch, state_size), dtype=jnp.float32)
    out = multimod_class_decoder(state, weight, bias)
    jax.block_until_ready(out)

    ref = jax.nn.softmax(state @ weight + bias, axis=-1)
    assert out.shape == (batch, n_classes)
    assert jnp.allclose(out, ref, atol=1e-3), "mismatch vs reference (small)"
    assert jnp.allclose(jnp.sum(out, axis=-1), 1.0, atol=1e-4)

    # --- Path 2: larger batch exercising the 'parallel' batch-tiled grid
    #     (includes a partial last tile) ---
    batch2 = 300
    state2 = jax.random.normal(k_state2, (batch2, state_size), dtype=jnp.float32)
    out2 = multimod_class_decoder(state2, weight, bias, batch_tile=64)
    jax.block_until_ready(out2)

    ref2 = jax.nn.softmax(state2 @ weight + bias, axis=-1)
    assert out2.shape == (batch2, n_classes)
    assert jnp.allclose(out2, ref2, atol=1e-3), "mismatch vs reference (tiled)"
    assert jnp.allclose(jnp.sum(out2, axis=-1), 1.0, atol=1e-4)

    print("KERNEL_OK")
</pallas_src>

<mosaic_0001>
module attributes {stable_mosaic.version = 11 : i64} {
  func.func @_decoder_kernel(%arg0: memref<8x32xf32, #tpu.memory_space<vmem>>, %arg1: memref<32x8xf32, #tpu.memory_space<vmem>>, %arg2: memref<1x8xf32, #tpu.memory_space<vmem>>, %arg3: memref<8x8xf32, #tpu.memory_space<vmem>>) attributes {dimension_semantics = [], scalar_prefetch = 0 : i64, scratch_operands = 0 : i64, tpu.core_type = #tpu.core_type<tc>} {
    %c0 = arith.constant 0 : index
    %c0_0 = arith.constant 0 : index
    %0 = vector.load %arg0[%c0, %c0_0] : memref<8x32xf32, #tpu.memory_space<vmem>>, vector<8x32xf32>
    %c0_1 = arith.constant 0 : index
    %c0_2 = arith.constant 0 : index
    %1 = vector.load %arg1[%c0_1, %c0_2] : memref<32x8xf32, #tpu.memory_space<vmem>>, vector<32x8xf32>
    %cst = arith.constant dense<0.000000e+00> : vector<8x8xf32>
    %2 = tpu.matmul %0, %1, %cst {dimension_numbers = #tpu.dot_dimension_numbers<[1], [0], [0], [1], [0, 0, 1, 1], [], []>} : vector<8x32xf32>, vector<32x8xf32>, vector<8x8xf32> -> vector<8x8xf32>
    %c0_3 = arith.constant 0 : index
    %c0_4 = arith.constant 0 : index
    %3 = vector.load %arg2[%c0_3, %c0_4] : memref<1x8xf32, #tpu.memory_space<vmem>>, vector<1x8xf32>
    %4 = vector.broadcast %3 : vector<1x8xf32> to vector<8x8xf32>
    %5 = arith.addf %2, %4 : vector<8x8xf32>
    %cst_5 = arith.constant dense<0xFF800000> : vector<8xf32>
    %6 = vector.multi_reduction <maximumf>, %5, %cst_5 [1] : vector<8x8xf32> to vector<8xf32>
    %7 = vector.shape_cast %6 : vector<8xf32> to vector<8x1xf32>
    %8 = vector.broadcast %7 : vector<8x1xf32> to vector<8x8xf32>
    %9 = arith.subf %5, %8 : vector<8x8xf32>
    %10 = math.exp %9 : vector<8x8xf32>
    %cst_6 = arith.constant dense<0.000000e+00> : vector<8xf32>
    %11 = vector.multi_reduction <add>, %10, %cst_6 [1] : vector<8x8xf32> to vector<8xf32>
    %12 = vector.shape_cast %11 : vector<8xf32> to vector<8x1xf32>
    %13 = vector.broadcast %12 : vector<8x1xf32> to vector<8x8xf32>
    %14 = arith.divf %10, %13 : vector<8x8xf32>
    %c0_7 = arith.constant 0 : index
    %c0_8 = arith.constant 0 : index
    %15 = vector.load %arg3[%c0_7, %c0_8] : memref<8x8xf32, #tpu.memory_space<vmem>>, vector<8x8xf32>
    tpu.vector_store %arg3[%c0_7, %c0_8], %14 {strides = array<i32>} : memref<8x8xf32, #tpu.memory_space<vmem>>, vector<8x8xf32>,
    return
  }
}

</mosaic_0001>

<llo_original>
// kernel: tpu_custom_call.1
$region0: #{tpu_custom_call.1}
  #allocation0 [shape = 'u32[]', space=smem, size = 0x4, offset = 0x4, fixed_abs, tag = 'smem constant byte address 0x4 - core index']
  #allocation1 [shape = 'u32[144,128]{1,0:T(1,128)}', space=vmem, size = 0x12000, scoped, tag = 'internal scratch']
  %s0 = inlined_call_operand.vmem [shape: f32[8,32], index: 0, kind: input, shape index: {}]
  %s1 = inlined_call_operand.vmem [shape: f32[32,8], index: 1, kind: input, shape index: {}]
  %s2 = inlined_call_operand.vmem [shape: f32[1,8], index: 2, kind: input, shape index: {}]
  %s3 = inlined_call_operand.hbm [shape: f32[8,8], index: 3, kind: output, shape index: {}]
  %s4 = sld [smem:[#allocation0]]
  $region22: #{tpu_custom_call.1} parent=0
    _
  %s6 = ssub.s32 1, %s4
  %s7 = scalar_select 0, %s6, %s4
  $region1: #{tpu_custom_call.1} parent=0
    #allocation2 [shape = 'u8[4096]{0}', space=vmem, size = 0x1000, scoped, tag = 'output window, operand 0, single buffered']
    #allocation3 [shape = 's32[1]{0}', space=sflag, size = 0x4, scoped, tag = 'scoped memory for tpu_custom_call.1']
    %8 = vsyncpa [#allocation3], 0
    // Predicated region
    $region2: #{tpu_custom_call.1} parent=1 // pred_check
      _
    $region3: #{tpu_custom_call.1} parent=1 // pred_check_branch
      %10 = sbr.rel (0) target = $region5
    $region4: #{tpu_custom_call.1} parent=1 // pred_region
      _
    $region5: #{tpu_custom_call.1} parent=1 // pred_fallthru
      _
    // Predicated region
    $region6: #{tpu_custom_call.1} parent=1 // pred_check
      _
    $region7: #{tpu_custom_call.1} parent=1 // pred_check_branch
      %12 = sbr.rel (0) target = $region9
    $region8: #{tpu_custom_call.1} parent=1 // pred_region
      _
    $region9: #{tpu_custom_call.1} parent=1 // pred_fallthru
      _
    // Predicated region
    $region10: #{tpu_custom_call.1} parent=1 // pred_check
      _
    $region11: #{tpu_custom_call.1} parent=1 // pred_check_branch
      %14 = sbr.rel (0) target = $region13
    $region12: #{tpu_custom_call.1} parent=1 // pred_region
      _
    $region13: #{tpu_custom_call.1} parent=1 // pred_fallthru
      _
    %v15 = vld [vmem:[%s0] sm:$0xff]
    %v16 = vld [vmem:[%s1] sm:$0xff]
    %v17 = vld [vmem:[%s1 + $0x8] sm:$0xff]
    %v18 = vld [vmem:[%s1 + $0x10] sm:$0xff]
    %v19 = vld [vmem:[%s1 + $0x18] sm:$0xff]
    %v20 = vld [vmem:[%s2] sm:$0x1]
    %v22 = vlaneseq
    %v23 = vshrl.u32 %v22, 7
    %v24 = vsub.s32 0, %v23
    %v25 = vrot.slane %v20, %v24
    %vm27 = vcmask 261120
    %v29 = vsel %vm27, %v15, 0
    %31 = vmatprep.subr.mxu0 0.0
    %32 = vmatpush1.msra.mxu0 %v16
    %33 = vmatprep.subr.mxu0 0.0
    %34 = vmatpush1.msra.mxu0 %v17
    %35 = vmatprep.subr.mxu0 0.0
    %36 = vmatpush1.msra.mxu0 %v18
    %37 = vmatprep.subr.mxu0 0.0
    %38 = vmatpush1.msra.mxu0 %v19
    %39 = vmatprep.subr.mxu0 0.0
    %40 = vmatpush1.msra.mxu0 0.0
    %41 = vmatprep.subr.mxu0 0.0
    %42 = vmatpush1.msra.mxu0 0.0
    %43 = vmatprep.subr.mxu0 0.0
    %44 = vmatpush1.msra.mxu0 0.0
    %45 = vmatprep.subr.mxu0 0.0
    %46 = vmatpush1.msra.mxu0 0.0
    %47 = vmatprep.subr.mxu0 0.0
    %48 = vmatpush1.msra.mxu0 0.0
    %49 = vmatprep.subr.mxu0 0.0
    %50 = vmatpush1.msra.mxu0 0.0
    %51 = vmatprep.subr.mxu0 0.0
    %52 = vmatpush1.msra.mxu0 0.0
    %53 = vmatprep.subr.mxu0 0.0
    %54 = vmatpush1.msra.mxu0 0.0
    %55 = vmatprep.subr.mxu0 0.0
    %56 = vmatpush1.msra.mxu0 0.0
    %57 = vmatprep.subr.mxu0 0.0
    %58 = vmatpush1.msra.mxu0 0.0
    %59 = vmatprep.subr.mxu0 0.0
    %60 = vmatpush1.msra.mxu0 0.0
    %61 = vmatprep.subr.mxu0 0.0
    %62 = vmatpush1.msra.mxu0 0.0
    %63 = vmatprep.subr.mxu0 0.0
    %64 = vmatpush1.msra.mxu0 0.0
    %65 = vmatprep.subr.mxu0 0.0
    %66 = vmatpush1.msra.mxu0 0.0
    %67 = vmatprep.subr.mxu0 0.0
    %68 = vmatpush1.msra.mxu0 0.0
    %69 = vmatprep.subr.mxu0 0.0
    %70 = vmatpush1.msra.mxu0 0.0
    %71 = vmatprep.subr.mxu0 0.0
    %72 = vmatpush1.msra.mxu0 0.0
    %73 = vmatprep.subr.mxu0 0.0
    %74 = vmatpush1.msra.mxu0 0.0
    %75 = vmatprep.subr.mxu0 0.0
    %76 = vmatpush1.msra.mxu0 0.0
    %77 = vmatprep.subr.mxu0 0.0
    %78 = vmatpush1.msra.mxu0 0.0
    %79 = vmatprep.subr.mxu0 0.0
    %80 = vmatpush1.msra.mxu0 0.0
    %81 = vmatprep.subr.mxu0 0.0
    %82 = vmatpush1.msra.mxu0 0.0
    %83 = vmatprep.subr.mxu0 0.0
    %84 = vmatpush1.msra.mxu0 0.0
    %85 = vmatprep.subr.mxu0 0.0
    %86 = vmatpush1.msra.mxu0 0.0
    %87 = vmatprep.subr.mxu0 0.0
    %88 = vmatpush1.msra.mxu0 0.0
    %89 = vmatprep.subr.mxu0 0.0
    %90 = vmatpush1.msra.mxu0 0.0
    %91 = vmatprep.subr.mxu0 0.0
    %92 = vmatpush1.msra.mxu0 0.0
    %93 = vmatprep.subr.mxu0 0.0
    %94 = vmatpush1.msra.mxu0 0.0
    %95 = vmatprep.mubr.f32.mxu0 0.0
    %96 = vmatmul.mubr.f32.gmra.mrb[0].mxu0 %v29
    %v97 = vpop.f32.mrb[0].mxu0
    %v98 = vadd.f32 %v25, %v97
    %v99 = vpop.f32.mrb[0].mxu0
    %100 = vdwg.mxu0
    %vm101 = vcmask 64512
    %v102 = vsel %vm101, %v98, -inf
    %103 = vmax.xlane.f32.xlu0 %v102
    %v104 = vpop.xlane.xlu0 %103
    %v105 = vsub.f32 %v98, %v104
    %v106 = vmul.f32 %v105, 1.442695
    %v107 = vpow.pop %v106
    %v108 = vsel %vm101, %v107, 0.0
    %109 = vadd.xlane.f32.xlu0 %v108
    %v110 = vpop.xlane.xlu0 %109
    %v111 = vrcp.pop %v110
    %v112 = vmul.f32 %v107, %v111
    %113 = vst.msk [vmem:[#allocation2] sm:$0xff] %vm101, %v112
    // Predicated region
    $region14: #{tpu_custom_call.1} parent=1 // pred_check
      _
    $region15: #{tpu_custom_call.1} parent=1 // pred_check_branch
      %115 = sbr.rel (0) target = $region17
    $region16: #{tpu_custom_call.1} parent=1 // pred_region
      %s117 = ssub.s32 128, 128
      %118 = vsyncadd [#allocation3], %s117
      %s120 = sshll.u32 [#allocation2], 4
      %s121 = int_to_ptr.vmem [resolvable:$true] %s120
      %123 = dma.vmem_to_hbm [thread:$0]  %s121, 128, %s3, [#allocation3]
    $region17: #{tpu_custom_call.1} parent=1 // pred_fallthru
      _
    // Predicated region
    $region18: #{tpu_custom_call.1} parent=1 // pred_check
      _
    $region19: #{tpu_custom_call.1} parent=1 // pred_check_branch
      %125 = sbr.rel (0) target = $region21
    $region20: #{tpu_custom_call.1} parent=1 // pred_region
      %126 = dma.done [#allocation3], 128
    $region21: #{tpu_custom_call.1} parent=1 // pred_fallthru
      _
    %127 = vsyncpa [#allocation3], 1

</llo_original>
